<compile_context>
chip_gen: v6e
topology: v6e:2x2x1
jax: 0.10.0
libtpu: 0.0.40
codegen_flags: <defaults>
</compile_context>

<pallas_src>
import functools

import jax
import jax.numpy as jnp
from jax.experimental import pallas as pl
from jax.experimental.pallas import tpu as pltpu

block_size = 8
n_embed = 64
vocab_size = 65  # tiny-shakespeare has 65 unique characters

LANE = 128  # TPU lane width; vocab (+ block_size pos rows) padded up to this.


def _round_up(x, m):
    return ((x + m - 1) // m) * m


def bigram_kernel(idx_ref, table_ref, out_ref, *, seq_len, vocab):
    """Single-invocation kernel (no grid); all refs are whole-array VMEM blocks.

    idx_ref:   (BT, 1)          int32  token ids, already sliced/flattened
    table_ref: (V_pad, V_pad)   f32    rows [:vocab]              = tok_emb @ W^T
                                       rows [vocab:vocab+T_block] = pos_emb @ W^T + b
    out_ref:   (BT, V_pad)      f32    lane-dense logits
    """
    BT, V_pad = out_ref.shape

    idx = idx_ref[...]                                               # (BT, 1) int32
    col = jax.lax.broadcasted_iota(jnp.int32, (BT, V_pad), 1)        # column ids
    row = jax.lax.broadcasted_iota(jnp.int32, (BT, V_pad), 0)        # row ids (b*T+t)
    pos_col = (row % seq_len) + vocab                                # vocab .. vocab+T-1

    # "Two-hot": selects the token row AND the (bias-carrying) positional row.
    # Token ids are < vocab and pos columns are >= vocab, so no collision;
    # padded rows >= vocab+seq_len are never selected and contribute zero.
    twohot = ((col == idx) | (col == pos_col)).astype(table_ref.dtype)  # (BT, V_pad)

    out_ref[...] = jnp.dot(twohot, table_ref[...],
                           preferred_element_type=jnp.float32)       # (BT, V_pad) f32


def prepare_params(token_table, pos_table, lm_w, lm_b, param_dtype=jnp.float32):
    """One-time weight prep: fuse both embedding tables with the lm_head.

    token_table: (V, D)  pos_table: (block_size, D)
    lm_w:        (V, D)  (PyTorch nn.Linear weight layout)   lm_b: (V,)

    Returns a single (V_pad, V_pad) table:
      rows [0, V)                   = token_embed @ W^T
      rows [V, V+block_size)        = pos_embed   @ W^T + b
      everything else               = 0
    """
    V, D = token_table.shape
    assert lm_w.shape == (V, D) and lm_b.shape == (V,)
    assert pos_table.shape == (block_size, D)
    V_pad = _round_up(V, LANE)
    assert V + block_size <= V_pad, "pos rows must fit in the padded table"

    w_t = lm_w.astype(jnp.float32).T                                  # (D, V)
    fused_tok = token_table.astype(jnp.float32) @ w_t                 # (V, V)
    fused_pos = pos_table.astype(jnp.float32) @ w_t + lm_b.astype(jnp.float32)[None, :]

    table = jnp.zeros((V_pad, V_pad), jnp.float32)
    table = table.at[:V, :V].set(fused_tok)
    table = table.at[V:V + block_size, :V].set(fused_pos)

    return {
        "table": table.astype(param_dtype),   # (V_pad, V_pad)
        "vocab_size": V,                      # plain python int
    }


@functools.partial(jax.jit, static_argnames=("vocab",))
def _forward_padded(idx, table, *, vocab):
    B, T_in = idx.shape
    T = min(T_in, block_size)
    BT = B * T
    V_pad = table.shape[1]

    # idx[:, -block_size:] and the (BT, 1) flatten happen here (free XLA ops),
    # so the kernel never does a lane-offset read.
    idx_flat = idx[:, T_in - T:].reshape(BT, 1)

    kernel = functools.partial(bigram_kernel, seq_len=T, vocab=vocab)
    out = pl.pallas_call(
        kernel,
        out_shape=jax.ShapeDtypeStruct((BT, V_pad), jnp.float32),
        in_specs=[
            pl.BlockSpec(memory_space=pltpu.MemorySpace.VMEM),  # idx (feeds VPU compare)
            pl.BlockSpec(memory_space=pltpu.MemorySpace.VMEM),  # fused table
        ],
        out_specs=pl.BlockSpec(memory_space=pltpu.MemorySpace.VMEM),
    )(idx_flat, table)

    # Back to the PyTorch-shaped result (B, T, vocab_size).
    return out[:, :vocab].reshape(B, T, vocab)


def bigram_forward(idx, params):
    """idx: (B, T_in) integer tokens -> logits (B, min(T_in, block_size), V)."""
    if idx.dtype != jnp.int32:
        idx = idx.astype(jnp.int32)
    return _forward_padded(idx, params["table"], vocab=params["vocab_size"])


if __name__ == "__main__":
    key = jax.random.PRNGKey(0)
    k_idx, k_tok, k_pos, k_w, k_b = jax.random.split(key, 5)

    B = 2
    T_in = 12  # longer than block_size so the [:, -block_size:] slice matters

    # Deterministic synthetic parameters (shapes from the module __init__).
    token_table = jax.random.normal(k_tok, (vocab_size, n_embed), jnp.float32) * 0.02
    pos_table = jax.random.normal(k_pos, (block_size, n_embed), jnp.float32) * 0.02
    lm_w = jax.random.normal(k_w, (vocab_size, n_embed), jnp.float32) * 0.02
    lm_b = jax.random.normal(k_b, (vocab_size,), jnp.float32) * 0.02

    idx = jax.random.randint(k_idx, (B, T_in), 0, vocab_size, jnp.int32)

    # One-time weight prep (fusion + padding); reused across calls.
    params = prepare_params(token_table, pos_table, lm_w, lm_b)

    logits = bigram_forward(idx, params)
    logits = jax.block_until_ready(logits)

    # Pure-JAX f32 reference of the PyTorch forward semantics.
    idx_s = idx[:, -block_size:]
    ref = token_table[idx_s] + pos_table[: idx_s.shape[1]][None]
    ref = ref @ lm_w.T + lm_b

    assert logits.shape == (B, block_size, vocab_size)
    # f32 fused table; tolerance covers MXU f32 pass accumulation order.
    assert jnp.allclose(logits, ref, atol=1e-3, rtol=1e-2), (
        float(jnp.max(jnp.abs(logits - ref))))

    # TODO(synk): loss() (cross-entropy) and generate() (multinomial sampling
    # loop) are not part of the forward pass and are not implemented here.

    print("KERNEL_OK")
</pallas_src>

<mosaic_0001>
module attributes {stable_mosaic.version = 11 : i64} {
  func.func @bigram_kernel(%arg0: memref<16x1xi32, #tpu.memory_space<vmem>>, %arg1: memref<128x128xf32, #tpu.memory_space<vmem>>, %arg2: memref<16x128xf32, #tpu.memory_space<vmem>>) attributes {dimension_semantics = [], scalar_prefetch = 0 : i64, scratch_operands = 0 : i64, tpu.core_type = #tpu.core_type<tc>} {
    %c0 = arith.constant 0 : index
    %c0_0 = arith.constant 0 : index
    %0 = vector.load %arg0[%c0, %c0_0] : memref<16x1xi32, #tpu.memory_space<vmem>>, vector<16x1xi32>
    %1 = tpu.iota {dimensions = array<i32: 1>} : vector<16x128xi32>
    %2 = tpu.iota {dimensions = array<i32: 0>} : vector<16x128xi32>
    %c8_i32 = arith.constant 8 : i32
    %c0_i32 = arith.constant 0 : i32
    %3 = arith.cmpi eq, %c8_i32, %c0_i32 : i32
    %c1_i32 = arith.constant 1 : i32
    %4 = arith.select %3, %c1_i32, %c8_i32 : i32
    %5 = vector.broadcast %4 : i32 to vector<16x128xi32>
    %6 = arith.remsi %2, %5 : vector<16x128xi32>
    %c0_i32_1 = arith.constant 0 : i32
    %7 = vector.broadcast %c0_i32_1 : i32 to vector<16x128xi32>
    %8 = arith.cmpi ne, %6, %7 : vector<16x128xi32>
    %c0_i32_2 = arith.constant 0 : i32
    %9 = vector.broadcast %c0_i32_2 : i32 to vector<16x128xi32>
    %10 = arith.cmpi slt, %6, %9 : vector<16x128xi32>
    %c0_i32_3 = arith.constant 0 : i32
    %11 = arith.cmpi slt, %4, %c0_i32_3 : i32
    %12 = vector.broadcast %11 : i1 to vector<16x128xi1>
    %13 = vector.broadcast %12 : vector<16x128xi1> to vector<16x128xi1>
    %14 = arith.xori %10, %13 : vector<16x128xi1>
    %15 = arith.andi %14, %8 : vector<16x128xi1>
    %16 = vector.broadcast %4 : i32 to vector<16x128xi32>
    %17 = arith.addi %6, %16 : vector<16x128xi32>
    %18 = arith.select %15, %17, %6 : vector<16x128xi1>, vector<16x128xi32>
    %c65_i32 = arith.constant 65 : i32
    %19 = vector.broadcast %c65_i32 : i32 to vector<16x128xi32>
    %20 = arith.addi %18, %19 : vector<16x128xi32>
    %21 = vector.broadcast %0 : vector<16x1xi32> to vector<16x128xi32>
    %22 = arith.cmpi eq, %1, %21 : vector<16x128xi32>
    %23 = arith.cmpi eq, %1, %20 : vector<16x128xi32>
    %24 = arith.ori %22, %23 : vector<16x128xi1>
    %25 = arith.extui %24 : vector<16x128xi1> to vector<16x128xi32>
    %26 = arith.sitofp %25 : vector<16x128xi32> to vector<16x128xf32>
    %c0_4 = arith.constant 0 : index
    %c0_5 = arith.constant 0 : index
    %27 = vector.load %arg1[%c0_4, %c0_5] : memref<128x128xf32, #tpu.memory_space<vmem>>, vector<128x128xf32>
    %cst = arith.constant dense<0.000000e+00> : vector<16x128xf32>
    %28 = tpu.matmul %26, %27, %cst {dimension_numbers = #tpu.dot_dimension_numbers<[1], [0], [0], [1], [0, 0, 1, 1], [], []>} : vector<16x128xf32>, vector<128x128xf32>, vector<16x128xf32> -> vector<16x128xf32>
    %c0_6 = arith.constant 0 : index
    %c0_7 = arith.constant 0 : index
    %29 = vector.load %arg2[%c0_6, %c0_7] : memref<16x128xf32, #tpu.memory_space<vmem>>, vector<16x128xf32>
    tpu.vector_store %arg2[%c0_6, %c0_7], %28 {strides = array<i32>} : memref<16x128xf32, #tpu.memory_space<vmem>>, vector<16x128xf32>,
    return
  }
}

</mosaic_0001>

<llo_original>
// kernel: _forward_padded.1
$region0: #{_forward_padded.1}
  #allocation0 [shape = 'u32[]', space=smem, size = 0x4, offset = 0x4, fixed_abs, tag = 'smem constant byte address 0x4 - core index']
  #allocation1 [shape = 'u32[144,128]{1,0:T(1,128)}', space=vmem, size = 0x12000, scoped, tag = 'internal scratch']
  %s0 = inlined_call_operand.vmem [shape: s32[16,1], index: 0, kind: input, shape index: {}]
  %s1 = inlined_call_operand.hbm [shape: f32[128,128], index: 1, kind: input, shape index: {}]
  %s2 = inlined_call_operand.vmem [shape: f32[16,128], index: 2, kind: output, shape index: {}]
  %s3 = sld [smem:[#allocation0]]
  $region22: #{_forward_padded.1} parent=0
    _
  %s5 = ssub.s32 1, %s3
  %s6 = scalar_select 0, %s5, %s3
  $region1: #{_forward_padded.1} parent=0
    #allocation2 [shape = 'u8[65536]{0}', space=vmem, size = 0x10000, scoped, tag = 'input window, operand 1, single buffered']
    #allocation3 [shape = 's32[1]{0}', space=sflag, size = 0x4, scoped, tag = 'scoped memory for _forward_padded.1']
    %7 = vsyncpa [#allocation3], 0
    // Predicated region
    $region2: #{_forward_padded.1} parent=1 // pred_check
      _
    $region3: #{_forward_padded.1} parent=1 // pred_check_branch
      %9 = sbr.rel (0) target = $region5
    $region4: #{_forward_padded.1} parent=1 // pred_region
      _
    $region5: #{_forward_padded.1} parent=1 // pred_fallthru
      _
    // Predicated region
    $region6: #{_forward_padded.1} parent=1 // pred_check
      _
    $region7: #{_forward_padded.1} parent=1 // pred_check_branch
      %11 = sbr.rel (0) target = $region9
    $region8: #{_forward_padded.1} parent=1 // pred_region
      %s13 = ssub.s32 2048, 2048
      %14 = vsyncadd [#allocation3], %s13
      %s15 = sshll.u32 [#allocation2], 4
      %s16 = int_to_ptr.vmem [resolvable:$true] %s15
      %21 = dma.hbm_to_vmem [thread:$0]  %s1, 2048, %s16, [#allocation3], 128, 128, 8
    $region9: #{_forward_padded.1} parent=1 // pred_fallthru
      _
    // Predicated region
    $region10: #{_forward_padded.1} parent=1 // pred_check
      _
    $region11: #{_forward_padded.1} parent=1 // pred_check_branch
      %23 = sbr.rel (0) target = $region13
    $region12: #{_forward_padded.1} parent=1 // pred_region
      %24 = dma.done [#allocation3], 2048
    $region13: #{_forward_padded.1} parent=1 // pred_fallthru
      _
    %v25 = vld [vmem:[%s0] sm:$0xff]
    %v26 = vld [vmem:[%s0 + $0x8] sm:$0xff]
    %v27 = vlaneseq
    %v28 = vand.u32 %v27, 127
    %v29 = vlaneseq
    %v30 = vshrl.u32 %v29, 7
    %v31 = vadd.s32 %v30, 8
    %vm32 = vcmp.lt.s32.totalorder %v30, 0
    %v33 = vsub.s32 0, %v30
    %v34 = vsel %vm32, %v33, %v30
    %v35 = vshrl.u32 %v34, 3
    %v36 = vand.u32 %v34, 7
    %v37 = vsub.s32 0, %v36
    %v38 = vsel %vm32, %v37, %v36
    %vm39 = vcmp.lt.s32.totalorder %v31, 0
    %v40 = vsub.s32 0, %v31
    %v41 = vsel %vm39, %v40, %v31
    %v42 = vshrl.u32 %v41, 3
    %v43 = vand.u32 %v41, 7
    %v44 = vsub.s32 0, %v43
    %v45 = vsel %vm39, %v44, %v43
    %vm46 = vcmp.ne.s32.totalorder %v38, 0
    %vm47 = vcmp.ne.s32.totalorder %v45, 0
    %vm48 = vcmp.lt.s32.totalorder %v38, 0
    %vm49 = vcmp.lt.s32.totalorder %v45, 0
    %vm50 = vmand %vm48, %vm46
    %vm51 = vmand %vm49, %vm47
    %v52 = vadd.s32 %v38, 8
    %v53 = vadd.s32 %v45, 8
    %v54 = vsel %vm50, %v52, %v38
    %v55 = vsel %vm51, %v53, %v45
    %v56 = vadd.s32 %v54, 65
    %v57 = vadd.s32 %v55, 65
    %58 = vset.pattern.permute.xlu0 0
    %59 = vperm.xlu0 %58, %v25
    %v60 = vpop.permute.xlu0 %59
    %61 = vset.pattern.permute.xlu0 0
    %62 = vperm.xlu0 %61, %v26
    %v63 = vpop.permute.xlu0 %62
    %vm64 = vcmp.eq.s32.totalorder %v28, %v60
    %vm65 = vcmp.eq.s32.totalorder %v28, %v63
    %vm66 = vcmp.eq.s32.totalorder %v28, %v56
    %vm67 = vcmp.eq.s32.totalorder %v28, %v57
    %vm68 = vmor %vm64, %vm66
    %vm69 = vmor %vm65, %vm67
    %v70 = vsel %vm68, 1, 0
    %v71 = vsel %vm69, 1, 0
    %v72 = vcvt.s32.f32 %v70
    %v73 = vcvt.s32.f32 %v71
    %v74 = vld [vmem:[#allocation2] sm:$0xff]
    %v75 = vld [vmem:[#allocation2 + $0x8] sm:$0xff]
    %v76 = vld [vmem:[#allocation2 + $0x10] sm:$0xff]
    %v77 = vld [vmem:[#allocation2 + $0x18] sm:$0xff]
    %v78 = vld [vmem:[#allocation2 + $0x20] sm:$0xff]
    %v79 = vld [vmem:[#allocation2 + $0x28] sm:$0xff]
    %v80 = vld [vmem:[#allocation2 + $0x30] sm:$0xff]
    %v81 = vld [vmem:[#allocation2 + $0x38] sm:$0xff]
    %v82 = vld [vmem:[#allocation2 + $0x40] sm:$0xff]
    %v83 = vld [vmem:[#allocation2 + $0x48] sm:$0xff]
    %v84 = vld [vmem:[#allocation2 + $0x50] sm:$0xff]
    %v85 = vld [vmem:[#allocation2 + $0x58] sm:$0xff]
    %v86 = vld [vmem:[#allocation2 + $0x60] sm:$0xff]
    %v87 = vld [vmem:[#allocation2 + $0x68] sm:$0xff]
    %v88 = vld [vmem:[#allocation2 + $0x70] sm:$0xff]
    %v89 = vld [vmem:[#allocation2 + $0x78] sm:$0xff]
    %90 = vmatprep.subr.mxu0 0.0
    %91 = vmatpush1.msra.mxu0 %v89
    %92 = vmatprep.subr.mxu0 0.0
    %93 = vmatpush1.msra.mxu0 %v88
    %94 = vmatprep.subr.mxu0 0.0
    %95 = vmatpush1.msra.mxu0 %v87
    %96 = vmatprep.subr.mxu0 0.0
    %97 = vmatpush1.msra.mxu0 %v86
    %98 = vmatprep.subr.mxu0 0.0
    %99 = vmatpush1.msra.mxu0 %v85
    %100 = vmatprep.subr.mxu0 0.0
    %101 = vmatpush1.msra.mxu0 %v84
    %102 = vmatprep.subr.mxu0 0.0
    %103 = vmatpush1.msra.mxu0 %v83
    %104 = vmatprep.subr.mxu0 0.0
    %105 = vmatpush1.msra.mxu0 %v82
    %106 = vmatprep.subr.mxu0 0.0
    %107 = vmatpush1.msra.mxu0 %v81
    %108 = vmatprep.subr.mxu0 0.0
    %109 = vmatpush1.msra.mxu0 %v80
    %110 = vmatprep.subr.mxu0 0.0
    %111 = vmatpush1.msra.mxu0 %v79
    %112 = vmatprep.subr.mxu0 0.0
    %113 = vmatpush1.msra.mxu0 %v78
    %114 = vmatprep.subr.mxu0 0.0
    %115 = vmatpush1.msra.mxu0 %v77
    %116 = vmatprep.subr.mxu0 0.0
    %117 = vmatpush1.msra.mxu0 %v76
    %118 = vmatprep.subr.mxu0 0.0
    %119 = vmatpush1.msra.mxu0 %v75
    %120 = vmatprep.subr.mxu0 0.0
    %121 = vmatpush1.msra.mxu0 %v74
    %122 = vmatprep.subr.mxu0 0.0
    %123 = vmatpush2.msra.mxu0 0.0
    %124 = vmatprep.subr.mxu0 0.0
    %125 = vmatpush2.msra.mxu0 0.0
    %126 = vmatprep.subr.mxu0 0.0
    %127 = vmatpush2.msra.mxu0 0.0
    %128 = vmatprep.subr.mxu0 0.0
    %129 = vmatpush2.msra.mxu0 0.0
    %130 = vmatprep.subr.mxu0 0.0
    %131 = vmatpush2.msra.mxu0 0.0
    %132 = vmatprep.subr.mxu0 0.0
    %133 = vmatpush2.msra.mxu0 0.0
    %134 = vmatprep.subr.mxu0 0.0
    %135 = vmatpush2.msra.mxu0 0.0
    %136 = vmatprep.subr.mxu0 0.0
    %137 = vmatpush2.msra.mxu0 0.0
    %138 = vmatprep.subr.mxu0 0.0
    %139 = vmatpush2.msra.mxu0 0.0
    %140 = vmatprep.subr.mxu0 0.0
    %141 = vmatpush2.msra.mxu0 0.0
    %142 = vmatprep.subr.mxu0 0.0
    %143 = vmatpush2.msra.mxu0 0.0
    %144 = vmatprep.subr.mxu0 0.0
    %145 = vmatpush2.msra.mxu0 0.0
    %146 = vmatprep.subr.mxu0 0.0
    %147 = vmatpush2.msra.mxu0 0.0
    %148 = vmatprep.subr.mxu0 0.0
    %149 = vmatpush2.msra.mxu0 0.0
    %150 = vmatprep.subr.mxu0 0.0
    %151 = vmatpush2.msra.mxu0 0.0
    %152 = vmatprep.subr.mxu0 0.0
    %153 = vmatpush2.msra.mxu0 0.0
    %154 = vmatprep.mubr.f32.mxu0 0.0
    %155 = vmatmul.mubr.f32.gmra.mxu0 %v72
    %v156 = vpop.f32.mrf.mxu0
    %v157 = vadd.f32 0.0, %v156
    %v158 = vpop.f32.mrf.mxu0
    %159 = vmatprep.mubr.f32.mxu0 0.0
    %160 = vmatmul.mubr.f32.gmra.mxu0 %v73
    %v161 = vpop.f32.mrf.mxu0
    %v162 = vadd.f32 0.0, %v161
    %v163 = vpop.f32.mrf.mxu0
    %164 = vdwg.mxu0
    %165 = vst [vmem:[%s2] sm:$0xff] %v157
    %166 = vst [vmem:[%s2 + $0x8] sm:$0xff] %v162
    // Predicated region
    $region14: #{_forward_padded.1} parent=1 // pred_check
      _
    $region15: #{_forward_padded.1} parent=1 // pred_check_branch
      %168 = sbr.rel (0) target = $region17
    $region16: #{_forward_padded.1} parent=1 // pred_region
      _
    $region17: #{_forward_padded.1} parent=1 // pred_fallthru
      _
    // Predicated region
    $region18: #{_forward_padded.1} parent=1 // pred_check
      _
    $region19: #{_forward_padded.1} parent=1 // pred_check_branch
      %170 = sbr.rel (0) target = $region21
    $region20: #{_forward_padded.1} parent=1 // pred_region
      _
    $region21: #{_forward_padded.1} parent=1 // pred_fallthru
      _
    %171 = vsyncpa [#allocation3], 1

</llo_original>
